<compile_context>
chip_gen: v5e
topology: v5e:2x2
jax: 0.10.0
libtpu: 0.0.40
codegen_flags: <defaults>
</compile_context>

<pallas_src>
import functools

import jax
import jax.numpy as jnp
from jax.experimental import pallas as pl
from jax.experimental.pallas import tpu as pltpu

EPS = 1e-5            # RMSNorm eps (Dia uses 1e-5)
MASK_VALUE = -1e30    # finite "-inf" for the additive key-padding bias


# --------------------------------- helpers -----------------------------------

def _rmsnorm(x, w):
    # x: (R, D) f32, w: (1, D) per-channel scale (ANERMSNorm over channel dim)
    var = jnp.mean(x * x, axis=-1, keepdims=True)
    return x * jax.lax.rsqrt(var + EPS) * w


def _dot(a, b):
    return jnp.dot(a, b, preferred_element_type=jnp.float32)


def _dot_nt(a, b):
    # a: (M, K), b: (N, K) -> (M, N), contraction on last dims, f32 accumulate.
    return jax.lax.dot_general(
        a, b, (((1,), (1,)), ((), ())), preferred_element_type=jnp.float32
    )


def _interleave_heads(first, second, num_heads, half):
    # Grouped-halves layout ([all heads' first halves | all second halves])
    # -> per-head contiguous layout [h0 first|h0 second|h1 first|...].
    parts = []
    for h in range(num_heads):
        sl = slice(h * half, (h + 1) * half)
        parts.append(first[:, sl])
        parts.append(second[:, sl])
    return jnp.concatenate(parts, axis=-1)


@functools.lru_cache(maxsize=None)
def _vmem_limit_bytes():
    # Generation-aware VMEM budget: ~80% of physical, leaving headroom for
    # Mosaic internal scratch / spills (v7x: ~51 of 64 MiB; v5e/v6e: ~102/128).
    cap = 64 * 1024 * 1024   # conservative fallback (v7x physical VMEM)
    try:
        info = pltpu.get_tpu_info()
        cap = int(getattr(info, "vmem_capacity_bytes", cap)) or cap
    except Exception:
        pass
    return int(cap * 0.8)


def _compiler_params():
    return pltpu.CompilerParams(
        dimension_semantics=("parallel", "parallel"),
        vmem_limit_bytes=_vmem_limit_bytes())


def _const_spec(shape):
    # Constant-index block (weights / norm scales): single-buffered to halve
    # its resident VMEM (DMA is issued once anyway).
    nd = len(shape)
    return pl.BlockSpec(shape, lambda b, t, nd=nd: (0,) * nd,
                        pipeline_mode=pl.Buffered(1))


# -------------------------- per-layer K/V projection --------------------------

def kv_projection_kernel(x_ref, sin_ref, cos_ref, w_pre_ref, wkv_ref,
                         k_out_ref, v_out_ref, *, num_heads, head_dim):
    H, Dh = num_heads, head_dim
    half = Dh // 2
    Hh = H * half
    HD = H * Dh

    x = x_ref[0]                                          # (tk, D) f32
    h = _rmsnorm(x, w_pre_ref[...]).astype(jnp.bfloat16)
    kv = _dot(h, wkv_ref[...])                            # (tk, 2*HD) f32

    k = kv[:, :HD]                                        # grouped-halves columns
    v = kv[:, HD:]                                        # per-head columns

    # Full-width RoPE (NeoX half rotation) on grouped-halves layout, f32 math.
    sin = sin_ref[...].astype(jnp.float32)                # (tk, Hh)
    cos = cos_ref[...].astype(jnp.float32)
    k1, k2 = k[:, :Hh], k[:, Hh:]
    kf = k1 * cos - k2 * sin                              # rotated first halves
    ks = k2 * cos + k1 * sin                              # rotated second halves

    # Re-interleave once into per-head-contiguous layout for K=head_dim matmuls.
    k_rot = _interleave_heads(kf, ks, H, half)            # (tk, HD)
    k_out_ref[0] = k_rot.astype(jnp.bfloat16)
    v_out_ref[0] = v.astype(jnp.bfloat16)


def kv_projection(x, sin_t, cos_t, p, *, num_heads, head_dim, tk):
    B, T, D = x.shape
    HD = num_heads * head_dim
    Hh = num_heads * (head_dim // 2)
    kernel = functools.partial(kv_projection_kernel, num_heads=num_heads,
                               head_dim=head_dim)
    in_specs = [
        pl.BlockSpec((1, tk, D), lambda b, t: (b, t, 0)),   # x sequence tile
        pl.BlockSpec((tk, Hh), lambda b, t: (t, 0)),        # sin (key tile)
        pl.BlockSpec((tk, Hh), lambda b, t: (t, 0)),        # cos (key tile)
        _const_spec(p["w_pre"].shape),
        _const_spec(p["wkv"].shape),
    ]
    out_specs = [
        pl.BlockSpec((1, tk, HD), lambda b, t: (b, t, 0)),  # K_rot (bf16)
        pl.BlockSpec((1, tk, HD), lambda b, t: (b, t, 0)),  # V (bf16)
    ]
    return pl.pallas_call(
        kernel,
        out_shape=(jax.ShapeDtypeStruct((B, T, HD), jnp.bfloat16),
                   jax.ShapeDtypeStruct((B, T, HD), jnp.bfloat16)),
        grid=(B, T // tk),
        in_specs=in_specs,
        out_specs=out_specs,
        compiler_params=_compiler_params(),
    )(x, sin_t, cos_t, p["w_pre"], p["wkv"])


# ------------------------------ encoder layer ---------------------------------

def encoder_layer_kernel(
    x_ref, k_ref, v_ref, bias_ref, sin_ref, cos_ref,
    w_pre_ref, wq_ref, wo_ref, w_post_ref, wi_ref, wo_mlp_ref,
    *rest, num_heads, head_dim, fuse_final_norm,
):
    if fuse_final_norm:
        w_final_ref, out_ref, ctx_ref = rest
    else:
        out_ref, ctx_ref = rest

    H, Dh = num_heads, head_dim
    half = Dh // 2
    Hh = H * half
    HD = H * Dh

    x_tile = x_ref[0]                                     # (tq, D) f32 (residual + Q)
    bias = bias_ref[0]                                    # (1, T) additive key bias

    # ---- pre-attention RMSNorm + Q projection (1/sqrt(Dh) folded into Wq) ----
    h = _rmsnorm(x_tile, w_pre_ref[...]).astype(jnp.bfloat16)
    q = _dot(h, wq_ref[...])                              # (tq, HD) grouped halves

    # ---- RoPE on the query tile, then per-head-contiguous re-interleave ----
    sin = sin_ref[...].astype(jnp.float32)                # (tq, Hh)
    cos = cos_ref[...].astype(jnp.float32)
    q1, q2 = q[:, :Hh], q[:, Hh:]
    qf = q1 * cos - q2 * sin
    qs = q2 * cos + q1 * sin
    q_rot = _interleave_heads(qf, qs, H, half).astype(jnp.bfloat16)   # (tq, HD)

    # ---- per-head attention: one K=head_dim score matmul per head ----
    for hd in range(H):
        lo, hi = hd * Dh, (hd + 1) * Dh
        k_h = k_ref[0, :, lo:hi]                          # (T, Dh) bf16, RoPE'd
        v_h = v_ref[0, :, lo:hi]                          # (T, Dh) bf16
        s = _dot_nt(q_rot[:, lo:hi], k_h) + bias          # (tq, T) f32
        s = s - jnp.max(s, axis=-1, keepdims=True)
        p = jnp.exp(s)                                    # f32 transcendentals
        p = p * pl.reciprocal(jnp.sum(p, axis=-1, keepdims=True), approx=True)
        o_h = _dot(p.astype(jnp.bfloat16), v_h)           # (tq, Dh) f32
        ctx_ref[:, lo:hi] = o_h.astype(jnp.bfloat16)      # lane-dense bf16 slab

    attn = _dot(ctx_ref[...], wo_ref[...])                # fused output projection
    x1 = x_tile + attn                                    # residual 1

    # ---- post-attention RMSNorm + gated MLP (silu(gate) * up) ----
    h2 = _rmsnorm(x1, w_post_ref[...]).astype(jnp.bfloat16)
    fused = _dot(h2, wi_ref[...])                         # (tq, 2F)
    F_ = wi_ref.shape[1] // 2
    hidden = (jax.nn.silu(fused[:, :F_]) * fused[:, F_:]).astype(jnp.bfloat16)
    mlp = _dot(hidden, wo_mlp_ref[...])
    y = x1 + mlp                                          # residual 2

    if fuse_final_norm:                                   # final encoder RMSNorm
        y = _rmsnorm(y, w_final_ref[...])
    out_ref[0] = y


def encoder_layer(x, k_rot, v, kbias, sin_t, cos_t, p, *, num_heads, head_dim,
                  tq, w_final=None):
    B, T, D = x.shape
    HD = num_heads * head_dim
    Hh = num_heads * (head_dim // 2)
    fuse_final = w_final is not None
    kernel = functools.partial(encoder_layer_kernel, num_heads=num_heads,
                               head_dim=head_dim, fuse_final_norm=fuse_final)
    weights = [p["w_pre"], p["wq"], p["wo"], p["w_post"], p["wi"], p["wo_mlp"]]
    if fuse_final:
        weights.append(w_final)

    in_specs = [
        pl.BlockSpec((1, tq, D), lambda b, t: (b, t, 0)),    # x query tile / residual
        pl.BlockSpec((1, T, HD), lambda b, t: (b, 0, 0)),    # K_rot (full seq, bf16)
        pl.BlockSpec((1, T, HD), lambda b, t: (b, 0, 0)),    # V (full seq, bf16)
        pl.BlockSpec((1, 1, T), lambda b, t: (b, 0, 0)),     # key-padding bias
        pl.BlockSpec((tq, Hh), lambda b, t: (t, 0)),         # sin (query tile)
        pl.BlockSpec((tq, Hh), lambda b, t: (t, 0)),         # cos (query tile)
    ] + [_const_spec(w.shape) for w in weights]

    return pl.pallas_call(
        kernel,
        out_shape=jax.ShapeDtypeStruct((B, T, D), jnp.float32),
        grid=(B, T // tq),
        in_specs=in_specs,
        out_specs=pl.BlockSpec((1, tq, D), lambda b, t: (b, t, 0)),
        scratch_shapes=[pltpu.VMEM((tq, HD), jnp.bfloat16)],  # ctx slab
        compiler_params=_compiler_params(),
    )(x, k_rot, v, kbias, sin_t, cos_t, *weights)


# ------------------------------- full forward ---------------------------------

def _round_up(x, m):
    return ((x + m - 1) // m) * m


def _choose_tq(T):
    # Keep a multi-step query grid (pipelining + megacore) without degenerating
    # to a single tile for lengths that are not multiples of 256.
    for cand in (256, 128):
        if T % cand == 0:
            return cand
    if T <= 256:
        return _round_up(T, 8)
    return 256     # sequence gets padded up to a multiple of 256


def ane_encoder_forward(x_ids, params, *, num_heads, head_dim, pad_value, tq=None):
    B, T0 = x_ids.shape
    if tq is None:
        tq = _choose_tq(T0)
    T = _round_up(T0, tq)
    assert (tq % 8 == 0) or (tq == T)
    if T != T0:
        # Pad with pad tokens; they are masked out of attention via the
        # key-padding bias and sliced off the output.
        x_ids = jnp.pad(x_ids, ((0, 0), (0, T - T0)), constant_values=pad_value)

    # Embedding lookup (glue, plain XLA gather).
    x = jnp.take(params["embedding"], x_ids, axis=0).astype(jnp.float32)  # (B, T, D)

    # Default positions = cumsum(ones) - 1 == arange(T), identical for every
    # batch row, so the rotary tables carry no batch dim.  Stored bf16 (upcast
    # in-kernel), head-tiled to match the grouped-halves Q/K column layout.
    half = head_dim // 2
    positions = jnp.arange(T, dtype=jnp.float32)
    fraction = 2.0 * jnp.arange(half, dtype=jnp.float32) / head_dim
    timescale = 10000.0 ** fraction                                  # (half,)
    angles = positions[:, None] / timescale                          # (T, half)
    sin_t = jnp.tile(jnp.sin(angles), (1, num_heads)).astype(jnp.bfloat16)
    cos_t = jnp.tile(jnp.cos(angles), (1, num_heads)).astype(jnp.bfloat16)

    # Non-causal padding mask reduced to an additive key-padding bias
    # (0 valid / -1e30 pad), broadcast over query rows inside the kernel.
    # Finite (not -inf) so fully-padded rows stay NaN-free.
    kbias = jnp.where(x_ids != pad_value, 0.0, MASK_VALUE).astype(jnp.float32)
    kbias = kbias[:, None, :]                                        # (B, 1, T)

    n_layers = len(params["layers"])
    assert n_layers >= 1
    for li, lp in enumerate(params["layers"]):
        # Hoisted per-layer K/V path: computed once, reused by every query tile.
        k_rot, v = kv_projection(x, sin_t, cos_t, lp, num_heads=num_heads,
                                 head_dim=head_dim, tk=tq)
        w_final = params["w_norm"] if li == n_layers - 1 else None
        x = encoder_layer(x, k_rot, v, kbias, sin_t, cos_t, lp,
                          num_heads=num_heads, head_dim=head_dim, tq=tq,
                          w_final=w_final)
    return x[:, :T0, :]


# ---------------- parameter construction / layout preparation ----------------

def init_params(key, *, vocab, d_model, num_heads, head_dim, d_ff, num_layers):
    # Standard (PyTorch-equivalent) per-head layout, f32.
    keys = jax.random.split(key, 2 + num_layers)
    params = {
        "embedding": 0.02 * jax.random.normal(keys[0], (vocab, d_model), jnp.float32),
        "w_norm": 1.0 + 0.01 * jax.random.normal(keys[1], (1, d_model), jnp.float32),
        "layers": [],
    }
    hd = num_heads * head_dim
    for li in range(num_layers):
        ks = jax.random.split(keys[2 + li], 8)
        params["layers"].append({
            "w_pre": 1.0 + 0.01 * jax.random.normal(ks[0], (1, d_model), jnp.float32),
            "wq": 0.02 * jax.random.normal(ks[1], (d_model, hd), jnp.float32),
            "wk": 0.02 * jax.random.normal(ks[2], (d_model, hd), jnp.float32),
            "wv": 0.02 * jax.random.normal(ks[3], (d_model, hd), jnp.float32),
            "wo": 0.02 * jax.random.normal(ks[4], (hd, d_model), jnp.float32),
            "w_post": 1.0 + 0.01 * jax.random.normal(ks[5], (1, d_model), jnp.float32),
            "wi": 0.02 * jax.random.normal(ks[6], (d_model, 2 * d_ff), jnp.float32),
            "wo_mlp": 0.02 * jax.random.normal(ks[7], (d_ff, d_model), jnp.float32),
        })
    return params


def _group_halves(w, num_heads, head_dim):
    # (D, H*Dh) per-head [first half | second half]
    #   -> [all heads' first halves | all heads' second halves]
    D_, _ = w.shape
    half = head_dim // 2
    w4 = w.reshape(D_, num_heads, 2, half)
    return jnp.concatenate(
        [w4[:, :, 0, :].reshape(D_, num_heads * half),
         w4[:, :, 1, :].reshape(D_, num_heads * half)], axis=-1)


def prepare_params(raw, *, num_heads, head_dim):
    # Kernel-side layout: grouped-halves Q/K columns, fused K|V weight, the
    # SDPA 1/sqrt(head_dim) scale folded into Wq, bf16 matmul weights
    # (norm scales and the embedding stay f32).
    scale = 1.0 / (head_dim ** 0.5)
    out = {"embedding": raw["embedding"], "w_norm": raw["w_norm"], "layers": []}
    for lp in raw["layers"]:
        wq_g = _group_halves(lp["wq"], num_heads, head_dim) * scale
        wk_g = _group_halves(lp["wk"], num_heads, head_dim)
        wkv = jnp.concatenate([wk_g, lp["wv"]], axis=-1)
        out["layers"].append({
            "w_pre": lp["w_pre"],
            "w_post": lp["w_post"],
            "wq": wq_g.astype(jnp.bfloat16),
            "wkv": wkv.astype(jnp.bfloat16),
            "wo": lp["wo"].astype(jnp.bfloat16),
            "wi": lp["wi"].astype(jnp.bfloat16),
            "wo_mlp": lp["wo_mlp"].astype(jnp.bfloat16),
        })
    return out


if __name__ == "__main__":
    B, T = 2, 16
    VOCAB, D_MODEL, NUM_HEADS, HEAD_DIM, D_FF, NUM_LAYERS = 256, 32, 4, 8, 64, 2
    TEXT_PAD_VALUE = 0

    key = jax.random.PRNGKey(0)
    k_params, k_ids = jax.random.split(key)
    raw = init_params(k_params, vocab=VOCAB, d_model=D_MODEL,
                      num_heads=NUM_HEADS, head_dim=HEAD_DIM,
                      d_ff=D_FF, num_layers=NUM_LAYERS)
    params = prepare_params(raw, num_heads=NUM_HEADS, head_dim=HEAD_DIM)

    # Token ids in [1, VOCAB); mark the last two positions of each row as
    # padding to exercise the key-padding mask path.
    x_ids = jax.random.randint(k_ids, (B, T), 1, VOCAB, dtype=jnp.int32)
    x_ids = x_ids.at[:, -2:].set(TEXT_PAD_VALUE)

    out = ane_encoder_forward(x_ids, params, num_heads=NUM_HEADS,
                              head_dim=HEAD_DIM, pad_value=TEXT_PAD_VALUE)
    out = jax.block_until_ready(out)
    assert out.shape == (B, T, D_MODEL)
    assert bool(jnp.all(jnp.isfinite(out)))
    print("KERNEL_OK")
</pallas_src>

<mosaic_0001>
module attributes {stable_mosaic.version = 11 : i64} {
  func.func @kv_projection_kernel(%arg0: i32, %arg1: i32, %arg2: memref<1x16x32xf32, #tpu.memory_space<vmem>>, %arg3: memref<16x16xbf16, #tpu.memory_space<vmem>>, %arg4: memref<16x16xbf16, #tpu.memory_space<vmem>>, %arg5: memref<1x32xf32, #tpu.memory_space<vmem>>, %arg6: memref<32x64xbf16, #tpu.memory_space<vmem>>, %arg7: memref<1x16x32xbf16, #tpu.memory_space<vmem>>, %arg8: memref<1x16x32xbf16, #tpu.memory_space<vmem>>) attributes {dimension_semantics = [#tpu.dimension_semantics<parallel>, #tpu.dimension_semantics<parallel>], iteration_bounds = array<i64: 2, 1>, scalar_prefetch = 0 : i64, scratch_operands = 0 : i64, tpu.core_type = #tpu.core_type<tc>, window_params = [{transform_indices = @transform_0, window_bounds = array<i64: 1, 16, 32>}, {transform_indices = @transform_1, window_bounds = array<i64: 16, 16>}, {transform_indices = @transform_2, window_bounds = array<i64: 16, 16>}, {pipeline_mode = #tpu.pipeline_mode<synchronous>, transform_indices = @transform_3, window_bounds = array<i64: 1, 32>}, {pipeline_mode = #tpu.pipeline_mode<synchronous>, transform_indices = @transform_4, window_bounds = array<i64: 32, 64>}, {transform_indices = @transform_5, window_bounds = array<i64: 1, 16, 32>}, {transform_indices = @transform_6, window_bounds = array<i64: 1, 16, 32>}]} {
    %c0 = arith.constant 0 : index
    %c0_0 = arith.constant 0 : index
    %c0_1 = arith.constant 0 : index
    %0 = vector.load %arg2[%c0, %c0_0, %c0_1] : memref<1x16x32xf32, #tpu.memory_space<vmem>>, vector<1x16x32xf32>
    %1 = vector.shape_cast %0 : vector<1x16x32xf32> to vector<16x32xf32>
    %c0_2 = arith.constant 0 : index
    %c0_3 = arith.constant 0 : index
    %2 = vector.load %arg5[%c0_2, %c0_3] : memref<1x32xf32, #tpu.memory_space<vmem>>, vector<1x32xf32>
    %3 = arith.mulf %1, %1 : vector<16x32xf32>
    %cst = arith.constant dense<0.000000e+00> : vector<16xf32>
    %4 = vector.multi_reduction <add>, %3, %cst [1] : vector<16x32xf32> to vector<16xf32>
    %5 = vector.shape_cast %4 : vector<16xf32> to vector<16x1xf32>
    %cst_4 = arith.constant 3.200000e+01 : f32
    %6 = vector.broadcast %cst_4 : f32 to vector<16x1xf32>
    %7 = arith.divf %5, %6 : vector<16x1xf32>
    %cst_5 = arith.constant 9.99999974E-6 : f32
    %8 = vector.broadcast %cst_5 : f32 to vector<16x1xf32>
    %9 = arith.addf %7, %8 : vector<16x1xf32>
    %10 = math.rsqrt %9 : vector<16x1xf32>
    %11 = vector.broadcast %10 : vector<16x1xf32> to vector<16x32xf32>
    %12 = arith.mulf %1, %11 : vector<16x32xf32>
    %13 = vector.broadcast %2 : vector<1x32xf32> to vector<16x32xf32>
    %14 = arith.mulf %12, %13 : vector<16x32xf32>
    %15 = arith.truncf %14 : vector<16x32xf32> to vector<16x32xbf16>
    %c0_6 = arith.constant 0 : index
    %c0_7 = arith.constant 0 : index
    %16 = vector.load %arg6[%c0_6, %c0_7] : memref<32x64xbf16, #tpu.memory_space<vmem>>, vector<32x64xbf16>
    %cst_8 = arith.constant dense<0.000000e+00> : vector<16x64xf32>
    %17 = tpu.matmul %15, %16, %cst_8 {dimension_numbers = #tpu.dot_dimension_numbers<[1], [0], [0], [1], [0, 0, 1, 1], [], []>} : vector<16x32xbf16>, vector<32x64xbf16>, vector<16x64xf32> -> vector<16x64xf32>
    %18 = vector.extract_strided_slice %17 {offsets = [0, 0], sizes = [16, 32], strides = [1, 1]} : vector<16x64xf32> to vector<16x32xf32>
    %19 = vector.extract_strided_slice %17 {offsets = [0, 32], sizes = [16, 32], strides = [1, 1]} : vector<16x64xf32> to vector<16x32xf32>
    %c0_9 = arith.constant 0 : index
    %c0_10 = arith.constant 0 : index
    %20 = vector.load %arg3[%c0_9, %c0_10] : memref<16x16xbf16, #tpu.memory_space<vmem>>, vector<16x16xbf16>
    %21 = arith.extf %20 : vector<16x16xbf16> to vector<16x16xf32>
    %c0_11 = arith.constant 0 : index
    %c0_12 = arith.constant 0 : index
    %22 = vector.load %arg4[%c0_11, %c0_12] : memref<16x16xbf16, #tpu.memory_space<vmem>>, vector<16x16xbf16>
    %23 = arith.extf %22 : vector<16x16xbf16> to vector<16x16xf32>
    %24 = vector.extract_strided_slice %18 {offsets = [0, 0], sizes = [16, 16], strides = [1, 1]} : vector<16x32xf32> to vector<16x16xf32>
    %25 = vector.extract_strided_slice %18 {offsets = [0, 16], sizes = [16, 16], strides = [1, 1]} : vector<16x32xf32> to vector<16x16xf32>
    %26 = arith.mulf %24, %23 : vector<16x16xf32>
    %27 = arith.mulf %25, %21 : vector<16x16xf32>
    %28 = arith.subf %26, %27 : vector<16x16xf32>
    %29 = arith.mulf %25, %23 : vector<16x16xf32>
    %30 = arith.mulf %24, %21 : vector<16x16xf32>
    %31 = arith.addf %29, %30 : vector<16x16xf32>
    %32 = vector.extract_strided_slice %28 {offsets = [0, 0], sizes = [16, 4], strides = [1, 1]} : vector<16x16xf32> to vector<16x4xf32>
    %33 = vector.extract_strided_slice %31 {offsets = [0, 0], sizes = [16, 4], strides = [1, 1]} : vector<16x16xf32> to vector<16x4xf32>
    %34 = vector.extract_strided_slice %28 {offsets = [0, 4], sizes = [16, 4], strides = [1, 1]} : vector<16x16xf32> to vector<16x4xf32>
    %35 = vector.extract_strided_slice %31 {offsets = [0, 4], sizes = [16, 4], strides = [1, 1]} : vector<16x16xf32> to vector<16x4xf32>
    %36 = vector.extract_strided_slice %28 {offsets = [0, 8], sizes = [16, 4], strides = [1, 1]} : vector<16x16xf32> to vector<16x4xf32>
    %37 = vector.extract_strided_slice %31 {offsets = [0, 8], sizes = [16, 4], strides = [1, 1]} : vector<16x16xf32> to vector<16x4xf32>
    %38 = vector.extract_strided_slice %28 {offsets = [0, 12], sizes = [16, 4], strides = [1, 1]} : vector<16x16xf32> to vector<16x4xf32>
    %39 = vector.extract_strided_slice %31 {offsets = [0, 12], sizes = [16, 4], strides = [1, 1]} : vector<16x16xf32> to vector<16x4xf32>
    %40 = tpu.concatenate %32, %33, %34, %35, %36, %37, %38, %39 in 1 : vector<16x4xf32>, vector<16x4xf32>, vector<16x4xf32>, vector<16x4xf32>, vector<16x4xf32>, vector<16x4xf32>, vector<16x4xf32>, vector<16x4xf32> -> vector<16x32xf32>
    %41 = arith.truncf %40 : vector<16x32xf32> to vector<16x32xbf16>
    %c0_13 = arith.constant 0 : index
    %c0_14 = arith.constant 0 : index
    %c0_15 = arith.constant 0 : index
    %42 = vector.load %arg7[%c0_13, %c0_14, %c0_15] : memref<1x16x32xbf16, #tpu.memory_space<vmem>>, vector<1x16x32xbf16>
    %43 = vector.shape_cast %42 : vector<1x16x32xbf16> to vector<16x32xbf16>
    %44 = vector.shape_cast %41 : vector<16x32xbf16> to vector<1x16x32xbf16>
    tpu.vector_store %arg7[%c0_13, %c0_14, %c0_15], %44 {strides = array<i32>} : memref<1x16x32xbf16, #tpu.memory_space<vmem>>, vector<1x16x32xbf16>,
    %45 = arith.truncf %19 : vector<16x32xf32> to vector<16x32xbf16>
    %c0_16 = arith.constant 0 : index
    %c0_17 = arith.constant 0 : index
    %c0_18 = arith.constant 0 : index
    %46 = vector.load %arg8[%c0_16, %c0_17, %c0_18] : memref<1x16x32xbf16, #tpu.memory_space<vmem>>, vector<1x16x32xbf16>
    %47 = vector.shape_cast %46 : vector<1x16x32xbf16> to vector<16x32xbf16>
    %48 = vector.shape_cast %45 : vector<16x32xbf16> to vector<1x16x32xbf16>
    tpu.vector_store %arg8[%c0_16, %c0_17, %c0_18], %48 {strides = array<i32>} : memref<1x16x32xbf16, #tpu.memory_space<vmem>>, vector<1x16x32xbf16>,
    return
  }
  func.func @transform_0(%arg0: i32, %arg1: i32) -> (i32, i32, i32) {
    %c0_i32 = arith.constant 0 : i32
    %c0_i32_0 = arith.constant 0 : i32
    return %arg0, %arg1, %c0_i32 : i32, i32, i32
  }
  func.func @transform_1(%arg0: i32, %arg1: i32) -> (i32, i32) {
    %c0_i32 = arith.constant 0 : i32
    %c0_i32_0 = arith.constant 0 : i32
    return %arg1, %c0_i32 : i32, i32
  }
  func.func @transform_2(%arg0: i32, %arg1: i32) -> (i32, i32) {
    %c0_i32 = arith.constant 0 : i32
    %c0_i32_0 = arith.constant 0 : i32
    return %arg1, %c0_i32 : i32, i32
  }
  func.func @transform_3(%arg0: i32, %arg1: i32) -> (i32, i32) {
    %c0_i32 = arith.constant 0 : i32
    %c0_i32_0 = arith.constant 0 : i32
    %c0_i32_1 = arith.constant 0 : i32
    return %c0_i32, %c0_i32_0 : i32, i32
  }
  func.func @transform_4(%arg0: i32, %arg1: i32) -> (i32, i32) {
    %c0_i32 = arith.constant 0 : i32
    %c0_i32_0 = arith.constant 0 : i32
    %c0_i32_1 = arith.constant 0 : i32
    return %c0_i32, %c0_i32_0 : i32, i32
  }
  func.func @transform_5(%arg0: i32, %arg1: i32) -> (i32, i32, i32) {
    %c0_i32 = arith.constant 0 : i32
    %c0_i32_0 = arith.constant 0 : i32
    return %arg0, %arg1, %c0_i32 : i32, i32, i32
  }
  func.func @transform_6(%arg0: i32, %arg1: i32) -> (i32, i32, i32) {
    %c0_i32 = arith.constant 0 : i32
    %c0_i32_0 = arith.constant 0 : i32
    return %arg0, %arg1, %c0_i32 : i32, i32, i32
  }
}

</mosaic_0001>

<llo_original>
// kernel: tpu_custom_call.1
$region0: #{tpu_custom_call.1}
  #allocation0 [shape = 'u32[]', space=smem, size = 0x4, offset = 0x4, fixed_abs, tag = 'smem constant byte address 0x4 - core index']
  #allocation1 [shape = 'u32[72,128]{1,0:T(1,128)}', space=vmem, size = 0x9000, scoped, tag = 'internal scratch']
  %s0 = inlined_call_operand.hbm [shape: f32[2,16,32], index: 0, kind: input, shape index: {}]
  %s1 = inlined_call_operand.hbm [shape: bf16[16,16], index: 1, kind: input, shape index: {}]
  %s2 = inlined_call_operand.hbm [shape: bf16[16,16], index: 2, kind: input, shape index: {}]
  %s3 = inlined_call_operand.vmem [shape: f32[1,32], index: 3, kind: input, shape index: {}]
  %s4 = inlined_call_operand.hbm [shape: bf16[32,64], index: 4, kind: input, shape index: {}]
  %s5 = inlined_call_operand.hbm [shape: bf16[2,16,32], index: 5, kind: output, shape index: {0}]
  %s6 = inlined_call_operand.hbm [shape: bf16[2,16,32], index: 6, kind: output, shape index: {1}]
  %7 = xla_tuple %s5, %s6
  %s8 = sld [smem:[#allocation0]]
  $region77: #{tpu_custom_call.1} parent=0
    _
  %s10 = ssub.s32 1, %s8
  %s11 = scalar_select 0, %s10, %s8
  $region1: #{tpu_custom_call.1} parent=0
    #allocation2 [shape = 'u8[16384]{0}', space=vmem, size = 0x4000, scoped, tag = 'input window, operand 0']
    #allocation3 [shape = 's32[2]{0}', space=sflag, size = 0x8, scoped, tag = 'scoped memory for tpu_custom_call.1']
    #allocation4 [shape = 's32[2]{0}', space=sflag, size = 0x8, scoped, tag = 'scoped memory for tpu_custom_call.1']
    #allocation5 [shape = 'u8[4096]{0}', space=vmem, size = 0x1000, scoped, tag = 'input window, operand 1, single buffered']
    #allocation6 [shape = 's32[1]{0}', space=sflag, size = 0x4, scoped, tag = 'scoped memory for tpu_custom_call.1']
    #allocation7 [shape = 'u8[4096]{0}', space=vmem, size = 0x1000, scoped, tag = 'input window, operand 2, single buffered']
    #allocation8 [shape = 'u8[8192]{0}', space=vmem, size = 0x2000, scoped, tag = 'input window, operand 4, single buffered']
    #allocation9 [shape = 's32[1]{0}', space=sflag, size = 0x4, scoped, tag = 'scoped memory for tpu_custom_call.1']
    #allocation10 [shape = 'u8[8192]{0}', space=vmem, size = 0x2000, scoped, tag = 'output window, operand 0']
    #allocation11 [shape = 'u8[8192]{0}', space=vmem, size = 0x2000, scoped, tag = 'output window, operand 1']
    #allocation12 [shape = 's32[2]{0}', space=sflag, size = 0x8, scoped, tag = 'scoped memory for tpu_custom_call.1']
    %12 = vsyncpa [#allocation3], 0
    %s13 = scalar_lea.sflag [#allocation3], 1
    %14 = vsyncpa %s13, 0
    %15 = vsyncpa [#allocation6], 0
    %16 = vsyncpa [#allocation9], 0
    %17 = vsyncpa [#allocation4], 0
    %s18 = scalar_lea.sflag [#allocation4], 1
    %19 = vsyncpa %s18, 0
    %20 = vsyncpa [#allocation12], 0
    %s21 = scalar_lea.sflag [#allocation12], 1
    %22 = vsyncpa %s21, 0
    loop: start=0, step=1, limit=4
    $region2: #{tpu_custom_call.1} parent=1 // loop_pre_header
      _
    $region3: #{tpu_custom_call.1} parent=1 // loop_header
      %s24 = sphi 0, %s28
      %p25 = scmp.ge.s32.totalorder %s24, 4
      %s31 = sphi 0, %s43
      %s32 = sphi 0, %s39
      %s33 = sphi 0, %s31
      %s34 = sphi 0, %s32
      %s35 = sphi 0, %s33
      %s36 = sphi 0, %s34
      %s48 = sphi 0, %s50
      %s51 = sphi 0, %s48
      %s52 = sphi 0, %s51
      %s68 = sphi 0, %s52
      %s74 = sphi 0, %s76
      %s77 = sphi 0, %s74
      %s78 = sphi 0, %s77
      %s94 = sphi 0, %s78
      %s100 = sphi 0, %s102
      %s103 = sphi 0, %s100
      %s104 = sphi 0, %s103
      %s120 = sphi 0, %s104
      %s124 = sphi 0, %s124
      %s126 = sphi 0, %s124
      %s127 = sphi 0, %s126
      %s141 = sphi 0, %s127
      %s145 = sphi 0, %s145
      %s147 = sphi 0, %s145
      %s148 = sphi 0, %s147
      %s162 = sphi 0, %s148
      %s170 = sphi 0, %s172
      %s173 = sphi 0, %s170
      %s174 = sphi 0, %s173
      %s190 = sphi 0, %s174
      %s198 = sphi 0, %s200
      %s201 = sphi 0, %s198
      %s202 = sphi 0, %s201
      %s218 = sphi 0, %s202
    $region4: #{tpu_custom_call.1} parent=1 // loop_header_branch
      %27 = sbr.rel (%p25) target = $region8
    $region5: #{tpu_custom_call.1} parent=1 // loop_body
      %s29 = ssub.s32 %s24, 1
      %s30 = ssub.s32 %s24, 2
      %s37 = sadd.s32 1, %s32
      %p38 = scmp.ge.s32.totalorder %s37, 1
      %s39 = scalar_select %p38, 0, %s37
      %s40 = sadd.s32 1, %s31
      %s41 = scalar_select %p38, %s40, %s31
      %p42 = scmp.ge.s32.totalorder %s41, 2
      %s43 = scalar_select %p42, 0, %s41
      %s44 = ssub.s32 %s31, %s43
      %s45 = ssub.s32 %s32, %s39
      %s46 = sor.u32 %s44, %s45
      %p47 = scmp.eq.s32.totalorder %s46, 0
      %s49 = sadd.s32 %s48, 1
      %s50 = scalar_select %p47, %s48, %s49
      %p53 = pneg %p47
      %p54 = scmp.eq.s32.totalorder %s24, 1
      %p55 = por %p53, %p54
      %p56 = scmp.ne.s32.totalorder %s48, %s51
      %p57 = scmp.eq.s32.totalorder %s24, 0
      %p58 = por %p56, %p57
      %p59 = scmp.ne.s32.totalorder %s48, %s51
      %p60 = scmp.eq.s32.totalorder %s29, 1
      %p61 = por %p59, %p60
      %p62 = scmp.ne.s32.totalorder %s51, %s52
      %p63 = scmp.eq.s32.totalorder %s29, 0
      %p64 = por %p62, %p63
      %p65 = scmp.ne.s32.totalorder %s51, %s52
      %p66 = scmp.eq.s32.totalorder %s30, 1
      %p67 = por %p65, %p66
      %p69 = scmp.ne.s32.totalorder %s52, %s68
      %p70 = scmp.eq.s32.totalorder %s30, 0
      %p71 = por %p69, %p70
      %s72 = ssub.s32 %s32, %s39
      %p73 = scmp.eq.s32.totalorder %s72, 0
      %s75 = sadd.s32 %s74, 1
      %s76 = scalar_select %p73, %s74, %s75
      %p79 = pneg %p73
      %p80 = scmp.eq.s32.totalorder %s24, 1
      %p81 = por %p79, %p80
      %p82 = scmp.ne.s32.totalorder %s74, %s77
      %p83 = scmp.eq.s32.totalorder %s24, 0
      %p84 = por %p82, %p83
      %p85 = scmp.ne.s32.totalorder %s74, %s77
      %p86 = scmp.eq.s32.totalorder %s29, 1
      %p87 = por %p85, %p86
      %p88 = scmp.ne.s32.totalorder %s77, %s78
      %p89 = scmp.eq.s32.totalorder %s29, 0
      %p90 = por %p88, %p89
      %p91 = scmp.ne.s32.totalorder %s77, %s78
      %p92 = scmp.eq.s32.totalorder %s30, 1
      %p93 = por %p91, %p92
      %p95 = scmp.ne.s32.totalorder %s78, %s94
      %p96 = scmp.eq.s32.totalorder %s30, 0
      %p97 = por %p95, %p96
      %s98 = ssub.s32 %s32, %s39
      %p99 = scmp.eq.s32.totalorder %s98, 0
      %s101 = sadd.s32 %s100, 1
      %s102 = scalar_select %p99, %s100, %s101
      %p105 = pneg %p99
      %p106 = scmp.eq.s32.totalorder %s24, 1
      %p107 = por %p105, %p106
      %p108 = scmp.ne.s32.totalorder %s100, %s103
      %p109 = scmp.eq.s32.totalorder %s24, 0
      %p110 = por %p108, %p109
      %p111 = scmp.ne.s32.totalorder %s100, %s103
      %p112 = scmp.eq.s32.totalorder %s29, 1
      %p113 = por %p111, %p112
      %p114 = scmp.ne.s32.totalorder %s103, %s104
      %p115 = scmp.eq.s32.totalorder %s29, 0
      %p116 = por %p114, %p115
      %p117 = scmp.ne.s32.totalorder %s103, %s104
      %p118 = scmp.eq.s32.totalorder %s30, 1
      %p119 = por %p117, %p118
      %p121 = scmp.ne.s32.totalorder %s104, %s120
      %p122 = scmp.eq.s32.totalorder %s30, 0
      %p123 = por %p121, %p122
      %s125 = sadd.s32 %s124, 1
      %p128 = scmp.eq.s32.totalorder %s24, 1
      %p129 = scmp.ne.s32.totalorder %s124, %s126
      %p130 = scmp.eq.s32.totalorder %s24, 0
      %p131 = por %p129, %p130
      %p132 = scmp.ne.s32.totalorder %s124, %s126
      %p133 = scmp.eq.s32.totalorder %s29, 1
      %p134 = por %p132, %p133
      %p135 = scmp.ne.s32.totalorder %s126, %s127
      %p136 = scmp.eq.s32.totalorder %s29, 0
      %p137 = por %p135, %p136
      %p138 = scmp.ne.s32.totalorder %s126, %s127
      %p139 = scmp.eq.s32.totalorder %s30, 1
      %p140 = por %p138, %p139
      %p142 = scmp.ne.s32.totalorder %s127, %s141
      %p143 = scmp.eq.s32.totalorder %s30, 0
      %p144 = por %p142, %p143
      %s146 = sadd.s32 %s145, 1
      %p149 = scmp.eq.s32.totalorder %s24, 1
      %p150 = scmp.ne.s32.totalorder %s145, %s147
      %p151 = scmp.eq.s32.totalorder %s24, 0
      %p152 = por %p150, %p151
      %p153 = scmp.ne.s32.totalorder %s145, %s147
      %p154 = scmp.eq.s32.totalorder %s29, 1
      %p155 = por %p153, %p154
      %p156 = scmp.ne.s32.totalorder %s147, %s148
      %p157 = scmp.eq.s32.totalorder %s29, 0
      %p158 = por %p156, %p157
      %p159 = scmp.ne.s32.totalorder %s147, %s148
      %p160 = scmp.eq.s32.totalorder %s30, 1
      %p161 = por %p159, %p160
      %p163 = scmp.ne.s32.totalorder %s148, %s162
      %p164 = scmp.eq.s32.totalorder %s30, 0
      %p165 = por %p163, %p164
      %s166 = ssub.s32 %s31, %s43
      %s167 = ssub.s32 %s32, %s39
      %s168 = sor.u32 %s166, %s167
      %p169 = scmp.eq.s32.totalorder %s168, 0
      %s171 = sadd.s32 %s170, 1
      %s172 = scalar_select %p169, %s170, %s171
      %p175 = pneg %p169
      %p176 = scmp.eq.s32.totalorder %s24, 1
      %p177 = por %p175, %p176
      %p178 = scmp.ne.s32.totalorder %s170, %s173
      %p179 = scmp.eq.s32.totalorder %s24, 0
      %p180 = por %p178, %p179
      %p181 = scmp.ne.s32.totalorder %s170, %s173
      %p182 = scmp.eq.s32.totalorder %s29, 1
      %p183 = por %p181, %p182
      %p184 = scmp.ne.s32.totalorder %s173, %s174
      %p185 = scmp.eq.s32.totalorder %s29, 0
      %p186 = por %p184, %p185
      %p187 = scmp.ne.s32.totalorder %s173, %s174
      %p188 = scmp.eq.s32.totalorder %s30, 1
      %p189 = por %p187, %p188
      %p191 = scmp.ne.s32.totalorder %s174, %s190
      %p192 = scmp.eq.s32.totalorder %s30, 0
      %p193 = por %p191, %p192
      %s194 = ssub.s32 %s31, %s43
      %s195 = ssub.s32 %s32, %s39
      %s196 = sor.u32 %s194, %s195
      %p197 = scmp.eq.s32.totalorder %s196, 0
      %s199 = sadd.s32 %s198, 1
      %s200 = scalar_select %p197, %s198, %s199
      %p203 = pneg %p197
      %p204 = scmp.eq.s32.totalorder %s24, 1
      %p205 = por %p203, %p204
      %p206 = scmp.ne.s32.totalorder %s198, %s201
      %p207 = scmp.eq.s32.totalorder %s24, 0
      %p208 = por %p206, %p207
      %p209 = scmp.ne.s32.totalorder %s198, %s201
      %p210 = scmp.eq.s32.totalorder %s29, 1
      %p211 = por %p209, %p210
      %p212 = scmp.ne.s32.totalorder %s201, %s202
      %p213 = scmp.eq.s32.totalorder %s29, 0
      %p214 = por %p212, %p213
      %p215 = scmp.ne.s32.totalorder %s201, %s202
      %p216 = scmp.eq.s32.totalorder %s30, 1
      %p217 = por %p215, %p216
      %p219 = scmp.ne.s32.totalorder %s202, %s218
      %p220 = scmp.eq.s32.totalorder %s30, 0
      %p221 = por %p219, %p220
      %p222 = scmp.le.s32.totalorder 1, %s24
      %p223 = scmp.lt.s32.totalorder %s24, 3
      %p224 = pnand %p222, %p223
      %p225 = pneg %p224
      // Predicated region
      $region9: #{tpu_custom_call.1} parent=5 // pred_check
        _
      $region10: #{tpu_custom_call.1} parent=5 // pred_check_branch
        %227 = sbr.rel (%p224) target = $region12
      $region11: #{tpu_custom_call.1} parent=5 // pred_region
        %s228 = ssub.s32 %s24, 1
        // Predicated region
        $region13: #{tpu_custom_call.1} parent=11 // pred_check
          %p229 = pneg %p90
        $region14: #{tpu_custom_call.1} parent=11 // pred_check_branch
          %231 = sbr.rel (%p229) target = $region16
        $region15: #{tpu_custom_call.1} parent=11 // pred_region
          %s232 = smul.u32 2, %s34
          %234 = vsyncadd [#allocation6], 0
          %s235 = smul.addr %s232, 4
          %s236 = scalar_lea.hbm %s1, %s235
          %s237 = sshll.u32 %s236, 4
          %s238 = int_to_ptr.hbm [resolvable:$true] %s237
          %s239 = sshll.u32 [#allocation5], 4
          %s240 = int_to_ptr.vmem [resolvable:$true] %s239
          %245 = dma.hbm_to_vmem [thread:$0]  %s238, 128, %s240, [#allocation6], 64, 64, 4
        $region16: #{tpu_custom_call.1} parent=11 // pred_fallthru
          _
        // Predicated region
        $region17: #{tpu_custom_call.1} parent=11 // pred_check
          %p246 = pneg %p116
        $region18: #{tpu_custom_call.1} parent=11 // pred_check_branch
          %248 = sbr.rel (%p246) target = $region20
        $region19: #{tpu_custom_call.1} parent=11 // pred_region
          %s249 = smul.u32 2, %s34
          %251 = vsyncadd [#allocation6], 0
          %s252 = smul.addr %s249, 4
          %s253 = scalar_lea.hbm %s2, %s252
          %s254 = sshll.u32 %s253, 4
          %s255 = int_to_ptr.hbm [resolvable:$true] %s254
          %s256 = sshll.u32 [#allocation7], 4
          %s257 = int_to_ptr.vmem [resolvable:$true] %s256
          %262 = dma.hbm_to_vmem [thread:$0]  %s255, 128, %s257, [#allocation6], 64, 64, 4
        $region20: #{tpu_custom_call.1} parent=11 // pred_fallthru
          _
        // Predicated region
        $region21: #{tpu_custom_call.1} parent=11 // pred_check
          %p263 = pneg %p137
        $region22: #{tpu_custom_call.1} parent=11 // pred_check_branch
          %265 = sbr.rel (%p263) target = $region24
        $region23: #{tpu_custom_call.1} parent=11 // pred_region
          _
        $region24: #{tpu_custom_call.1} parent=11 // pred_fallthru
          _
        // Predicated region
        $region25: #{tpu_custom_call.1} parent=11 // pred_check
          %p266 = pneg %p158
        $region26: #{tpu_custom_call.1} parent=11 // pred_check_branch
          %268 = sbr.rel (%p266) target = $region28
        $region27: #{tpu_custom_call.1} parent=11 // pred_region
          %270 = vsyncadd [#allocation9], 0
          %s271 = sshll.u32 %s4, 4
          %s272 = int_to_ptr.hbm [resolvable:$true] %s271
          %s273 = sshll.u32 [#allocation8], 4
          %s274 = int_to_ptr.vmem [resolvable:$true] %s273
          %279 = dma.hbm_to_vmem [thread:$0]  %s272, 256, %s274, [#allocation9], 64, 64, 4
        $region28: #{tpu_custom_call.1} parent=11 // pred_fallthru
          _
      $region12: #{tpu_custom_call.1} parent=5 // pred_fallthru
        _
      %p280 = scmp.lt.s32.totalorder %s24, 2
      // Predicated region
      $region29: #{tpu_custom_call.1} parent=5 // pred_check
        %p281 = pneg %p280
      $region30: #{tpu_custom_call.1} parent=5 // pred_check_branch
        %283 = sbr.rel (%p281) target = $region32
      $region31: #{tpu_custom_call.1} parent=5 // pred_region
        // Predicated region
        $region33: #{tpu_custom_call.1} parent=31 // pred_check
          %p284 = pneg %p58
        $region34: #{tpu_custom_call.1} parent=31 // pred_check_branch
          %286 = sbr.rel (%p284) target = $region36
        $region35: #{tpu_custom_call.1} parent=31 // pred_region
          %s287 = sand.u32 %s48, 1
          %s288 = scalar_lea.sflag [#allocation3], %s287
          %s289 = sand.u32 %s48, 1
          %s290 = smul.addr %s289, 16
          %s291 = scalar_lea.vmem [#allocation2], %s290
          %s292 = smul.u32 2, %s32
          %294 = vsyncadd %s288, 0
          %s295 = smul.addr %s31, 2
          %s296 = sadd.s32 %s292, %s295
          %s297 = smul.addr %s296, 8
          %s298 = scalar_lea.hbm %s0, %s297
          %s299 = sshll.u32 %s298, 4
          %s300 = int_to_ptr.hbm [resolvable:$true] %s299
          %s301 = sshll.u32 %s291, 4
          %s302 = int_to_ptr.vmem [resolvable:$true] %s301
          %307 = dma.hbm_to_vmem [thread:$0]  %s300, 256, %s302, %s288, 128, 128, 8
        $region36: #{tpu_custom_call.1} parent=31 // pred_fallthru
          _
      $region32: #{tpu_custom_call.1} parent=5 // pred_fallthru
        _
      %p308 = scmp.le.s32.totalorder 1, %s24
      %p309 = scmp.lt.s32.totalorder %s24, 3
      %p310 = pnand %p308, %p309
      %p311 = pneg %p310
      // Predicated region
      $region37: #{tpu_custom_call.1} parent=5 // pred_check
        _
      $region38: #{tpu_custom_call.1} parent=5 // pred_check_branch
        %313 = sbr.rel (%p310) target = $region40
      $region39: #{tpu_custom_call.1} parent=5 // pred_region
        %s314 = ssub.s32 %s24, 1
        %s315 = sand.u32 %s51, 1
        %s316 = scalar_lea.sflag [#allocation3], %s315
        %s317 = sand.u32 %s51, 1
        %s318 = smul.addr %s317, 16
        %s319 = scalar_lea.vmem [#allocation2], %s318
        // Predicated region
        $region41: #{tpu_custom_call.1} parent=39 // pred_check
          %p320 = pneg %p64
        $region42: #{tpu_custom_call.1} parent=39 // pred_check_branch
          %322 = sbr.rel (%p320) target = $region44
        $region43: #{tpu_custom_call.1} parent=39 // pred_region
          %324 = dma.done %s316, 256
        $region44: #{tpu_custom_call.1} parent=39 // pred_fallthru
          _
        // Predicated region
        $region45: #{tpu_custom_call.1} parent=39 // pred_check
          %p325 = pneg %p90
        $region46: #{tpu_custom_call.1} parent=39 // pred_check_branch
          %327 = sbr.rel (%p325) target = $region48
        $region47: #{tpu_custom_call.1} parent=39 // pred_region
          %329 = dma.done [#allocation6], 128
        $region48: #{tpu_custom_call.1} parent=39 // pred_fallthru
          _
        // Predicated region
        $region49: #{tpu_custom_call.1} parent=39 // pred_check
          %p330 = pneg %p116
        $region50: #{tpu_custom_call.1} parent=39 // pred_check_branch
          %332 = sbr.rel (%p330) target = $region52
        $region51: #{tpu_custom_call.1} parent=39 // pred_region
          %334 = dma.done [#allocation6], 128
        $region52: #{tpu_custom_call.1} parent=39 // pred_fallthru
          _
        // Predicated region
        $region53: #{tpu_custom_call.1} parent=39 // pred_check
          %p335 = pneg %p158
        $region54: #{tpu_custom_call.1} parent=39 // pred_check_branch
          %337 = sbr.rel (%p335) target = $region56
        $region55: #{tpu_custom_call.1} parent=39 // pred_region
          %339 = dma.done [#allocation9], 256
        $region56: #{tpu_custom_call.1} parent=39 // pred_fallthru
          _
        %s340 = sand.u32 %s51, 1
        %s341 = scalar_lea.sflag [#allocation3], %s340
        %s342 = sand.u32 %s51, 1
        %s343 = smul.addr %s342, 16
        %s344 = scalar_lea.vmem [#allocation2], %s343
        %p345 = pneg %p64
        %p346 = pneg %p61
        %p347 = pneg %p90
        %p348 = pneg %p87
        %p349 = pneg %p116
        %p350 = pneg %p113
        %p351 = pneg %p137
        %p352 = pneg %p134
        %p353 = pneg %p158
        %p354 = pneg %p155
        %p355 = pneg %p186
        %p356 = pneg %p183
        %s357 = sand.u32 %s173, 1
        %s358 = scalar_lea.sflag [#allocation4], %s357
        %s359 = sand.u32 %s173, 1
        %s360 = smul.addr %s359, 8
        %s361 = scalar_lea.vmem [#allocation10], %s360
        %p362 = pneg %p214
        %p363 = pneg %p211
        %s364 = sand.u32 %s201, 1
        %s365 = scalar_lea.sflag [#allocation12], %s364
        %s366 = sand.u32 %s201, 1
        %s367 = smul.addr %s366, 8
        %s368 = scalar_lea.vmem [#allocation11], %s367
        %s369 = smul.u32 2, %s34
        %s370 = smul.u32 2, %s34
        %s371 = smul.u32 2, %s34
        %s372 = smul.u32 2, %s34
        %s373 = smul.u32 2, %s34
        %v375 = vld [vmem:[%s319] sm:$0xff]
        %v376 = vld [vmem:[%s319 + $0x8] sm:$0xff]
        %v377 = vld [vmem:[%s3] sm:$0x1]
        %v378 = vmul.f32 %v375, %v375
        %v379 = vmul.f32 %v376, %v376
        %vm380 = vcmask 261120
        %v381 = vsel %vm380, %v378, 0.0
        %382 = vadd.xlane.f32.xlu0 %v381
        %v383 = vpop.xlane.xlu0 %382
        %v384 = vsel %vm380, %v379, 0.0
        %385 = vadd.xlane.f32.xlu0 %v384
        %v386 = vpop.xlane.xlu0 %385
        %v387 = vrcp.pop 32.0
        %v388 = vmul.f32 32.0, %v387
        %v389 = vsub.f32 1.0, %v388
        %v390 = vmul.f32 %v387, %v389
        %v391 = vadd.f32 %v387, %v390
        %vm392 = vweird.f32 %v387
        %v393 = vsel %vm392, %v387, %v391
        %v394 = vmul.f32 %v383, %v393
        %v395 = vmul.f32 %v386, %v393
        %v396 = vadd.f32 %v394, 1e-05
        %v397 = vadd.f32 %v395, 1e-05
        %v398 = vrsqrt.pop %v396
        %v399 = vmul.f32 %v398, %v396
        %v400 = vmul.f32 %v399, %v398
        %v401 = vmul.f32 0.5, %v400
        %v402 = vsub.f32 1.5, %v401
        %v403 = vmul.f32 %v398, %v402
        %vm404 = vweird.f32 %v396
        %vm405 = vweird.f32 %v398
        %vm406 = vmor %vm404, %vm405
        %v407 = vsel %vm406, %v398, %v403
        %v408 = vrsqrt.pop %v397
        %v409 = vmul.f32 %v408, %v397
        %v410 = vmul.f32 %v409, %v408
        %v411 = vmul.f32 0.5, %v410
        %v412 = vsub.f32 1.5, %v411
        %v413 = vmul.f32 %v408, %v412
        %vm414 = vweird.f32 %v397
        %vm415 = vweird.f32 %v408
        %vm416 = vmor %vm414, %vm415
        %v417 = vsel %vm416, %v408, %v413
        %v418 = vmul.f32 %v375, %v407
        %v419 = vmul.f32 %v376, %v417
        %v421 = vperm.slane %v377, 0
        %v423 = vmul.f32 %v418, %v421
        %v424 = vmul.f32 %v419, %v421
        %v425 = vpack.c.bf16 %v424, %v423
        %v426 = vld [vmem:[#allocation8] sm:$0xf]
        %v427 = vld [vmem:[#allocation8 + $0x4] sm:$0xf]
        %v428 = vld [vmem:[#allocation8 + $0x8] sm:$0xf]
        %v429 = vld [vmem:[#allocation8 + $0xc] sm:$0xf]
        %v434 = vunpack.c.l.b16 %v426
        %v435 = vunpack.c.l.b16 %v427
        %v436 = vunpack.c.l.b16 %v428
        %v437 = vunpack.c.l.b16 %v429
        %v438 = vpack.c.b16 %v435, %v434
        %v439 = vpack.c.b16 %v437, %v436
        %v443 = vsel %vm380, %v425, 0
        %445 = vmatpush.bf16.msra.mxu0 0
        %446 = vmatpush.bf16.msra.mxu0 0
        %447 = vmatpush.bf16.msra.mxu0 0
        %448 = vmatpush.bf16.msra.mxu0 0
        %449 = vmatpush.bf16.msra.mxu0 0
        %450 = vmatpush.bf16.msra.mxu0 0
        %451 = vmatpush.bf16.msra.mxu0 %v439
        %452 = vmatpush.bf16.msra.mxu0 %v438
        %453 = vmatmul.bf16.gmra.mxu0 %v443
        %v454 = vpop.f32.mrf.mxu0
        %v455 = vadd.f32 0.0, %v454
        %v456 = vpop.f32.mrf.mxu0
        %v457 = vadd.f32 0.0, %v456
        %458 = vdwg.mxu0
        %v459 = vld [vmem:[#allocation5] sm:$0xf]
        %v460 = vld [vmem:[#allocation5 + $0x4] sm:$0xf]
        %v461 = vunpack.c.l.bf16 %v459
        %v462 = vunpack.c.l.bf16 %v460
        %v463 = vld [vmem:[#allocation7] sm:$0xf]
        %v464 = vld [vmem:[#allocation7 + $0x4] sm:$0xf]
        %v465 = vunpack.c.l.bf16 %v463
        %v466 = vunpack.c.l.bf16 %v464
        %v467 = vmul.f32 %v455, %v465
        %v468 = vmul.f32 %v457, %v466
        %471 = vrot.lane.b32.xlu0 %v461, 16
        %v472 = vpop.permute.xlu0 %471
        %473 = vrot.lane.b32.xlu0 %v462, 16
        %v474 = vpop.permute.xlu0 %473
        %v477 = vmul.f32 %v455, %v472
        %v478 = vmul.f32 %v457, %v474
        %481 = vrot.lane.b32.xlu0 %v477, 112
        %v482 = vpop.permute.xlu0 %481
        %483 = vrot.lane.b32.xlu0 %v478, 112
        %v484 = vpop.permute.xlu0 %483
        %v487 = vsub.f32 %v467, %v482
        %v488 = vsub.f32 %v468, %v484
        %491 = vrot.lane.b32.xlu0 %v465, 16
        %v492 = vpop.permute.xlu0 %491
        %493 = vrot.lane.b32.xlu0 %v466, 16
        %v494 = vpop.permute.xlu0 %493
        %v497 = vmul.f32 %v455, %v492
        %v498 = vmul.f32 %v457, %v494
        %v499 = vmul.f32 %v455, %v461
        %v500 = vmul.f32 %v457, %v462
        %503 = vrot.lane.b32.xlu0 %v499, 16
        %v504 = vpop.permute.xlu0 %503
        %505 = vrot.lane.b32.xlu0 %v500, 16
        %v506 = vpop.permute.xlu0 %505
        %v509 = vadd.f32 %v497, %v504
        %v510 = vadd.f32 %v498, %v506
        %513 = vrot.lane.b32.xlu0 %v509, 116
        %v514 = vpop.permute.xlu0 %513
        %515 = vrot.lane.b32.xlu0 %v510, 116
        %v516 = vpop.permute.xlu0 %515
        %521 = vrot.lane.b32.xlu0 %v487, 4
        %v522 = vpop.permute.xlu0 %521
        %523 = vrot.lane.b32.xlu0 %v488, 4
        %v524 = vpop.permute.xlu0 %523
        %527 = vrot.lane.b32.xlu0 %v509, 120
        %v528 = vpop.permute.xlu0 %527
        %529 = vrot.lane.b32.xlu0 %v510, 120
        %v530 = vpop.permute.xlu0 %529
        %533 = vrot.lane.b32.xlu0 %v487, 8
        %v534 = vpop.permute.xlu0 %533
        %535 = vrot.lane.b32.xlu0 %v488, 8
        %v536 = vpop.permute.xlu0 %535
        %539 = vrot.lane.b32.xlu0 %v509, 124
        %v540 = vpop.permute.xlu0 %539
        %541 = vrot.lane.b32.xlu0 %v510, 124
        %v542 = vpop.permute.xlu0 %541
        %545 = vrot.lane.b32.xlu0 %v487, 12
        %v546 = vpop.permute.xlu0 %545
        %547 = vrot.lane.b32.xlu0 %v488, 12
        %v548 = vpop.permute.xlu0 %547
        %vm551 = vcmask 31744
        %v552 = vsel %vm551, %v487, %v514
        %v553 = vsel %vm551, %v488, %v516
        %vm554 = vcmask 64512
        %v555 = vsel %vm554, %v552, %v522
        %v556 = vsel %vm554, %v553, %v524
        %vm557 = vcmask 97280
        %v558 = vsel %vm557, %v555, %v528
        %v559 = vsel %vm557, %v556, %v530
        %vm560 = vcmask 130048
        %v561 = vsel %vm560, %v558, %v534
        %v562 = vsel %vm560, %v559, %v536
        %vm563 = vcmask 162816
        %v564 = vsel %vm563, %v561, %v540
        %v565 = vsel %vm563, %v562, %v542
        %vm566 = vcmask 195584
        %v567 = vsel %vm566, %v564, %v546
        %v568 = vsel %vm566, %v565, %v548
        %vm569 = vcmask 228352
        %v570 = vsel %vm569, %v567, %v509
        %v571 = vsel %vm569, %v568, %v510
        %v572 = vpack.c.bf16 %v570, %v570
        %v573 = vpack.c.bf16 %v571, %v571
        %vm574 = vcmask 257024
        %575 = vst.msk [vmem:[%s361] sm:$0xf] %vm574, %v572
        %576 = vst.msk [vmem:[%s361 + $0x4] sm:$0xf] %vm574, %v573
        %v577 = vpack.c.bf16 %v455, %v455
        %v578 = vpack.c.bf16 %v457, %v457
        %581 = vrot.lane.b32.xlu0 %v577, 96
        %v582 = vpop.permute.xlu0 %581
        %583 = vrot.lane.b32.xlu0 %v578, 96
        %v584 = vpop.permute.xlu0 %583
        %587 = vst.msk [vmem:[%s368] sm:$0xf] %vm574, %v582
        %588 = vst.msk [vmem:[%s368 + $0x4] sm:$0xf] %vm574, %v584
        %s589 = sand.u32 %s173, 1
        %s590 = scalar_lea.sflag [#allocation4], %s589
        %s591 = sand.u32 %s173, 1
        %s592 = smul.addr %s591, 8
        %s593 = scalar_lea.vmem [#allocation10], %s592
        %s594 = sand.u32 %s201, 1
        %s595 = scalar_lea.sflag [#allocation12], %s594
        %s596 = sand.u32 %s201, 1
        %s597 = smul.addr %s596, 8
        %s598 = scalar_lea.vmem [#allocation11], %s597
        // Predicated region
        $region57: #{tpu_custom_call.1} parent=39 // pred_check
          %p599 = pneg %p183
        $region58: #{tpu_custom_call.1} parent=39 // pred_check_branch
          %601 = sbr.rel (%p599) target = $region60
        $region59: #{tpu_custom_call.1} parent=39 // pred_region
          %s602 = smul.u32 2, %s34
          %604 = vsyncadd %s590, 0
          %s605 = smul.addr %s33, 2
          %s606 = sadd.s32 %s602, %s605
          %s607 = smul.addr %s606, 4
          %s608 = scalar_lea.hbm %s5, %s607
          %s609 = sshll.u32 %s593, 4
          %s610 = int_to_ptr.vmem [resolvable:$true] %s609
          %s611 = sshll.u32 %s608, 4
          %s612 = int_to_ptr.hbm [resolvable:$true] %s611
          %617 = dma.vmem_to_hbm [thread:$0]  %s610, 128, %s612, %s590, 64, 64, 4
        $region60: #{tpu_custom_call.1} parent=39 // pred_fallthru
          _
        // Predicated region
        $region61: #{tpu_custom_call.1} parent=39 // pred_check
          %p618 = pneg %p211
        $region62: #{tpu_custom_call.1} parent=39 // pred_check_branch
          %620 = sbr.rel (%p618) target = $region64
        $region63: #{tpu_custom_call.1} parent=39 // pred_region
          %s621 = smul.u32 2, %s34
          %623 = vsyncadd %s595, 0
          %s624 = smul.addr %s33, 2
          %s625 = sadd.s32 %s621, %s624
          %s626 = smul.addr %s625, 4
          %s627 = scalar_lea.hbm %s6, %s626
          %s628 = sshll.u32 %s598, 4
          %s629 = int_to_ptr.vmem [resolvable:$true] %s628
          %s630 = sshll.u32 %s627, 4
          %s631 = int_to_ptr.hbm [resolvable:$true] %s630
          %636 = dma.vmem_to_hbm [thread:$0]  %s629, 128, %s631, %s595, 64, 64, 4
        $region64: #{tpu_custom_call.1} parent=39 // pred_fallthru
          _
      $region40: #{tpu_custom_call.1} parent=5 // pred_fallthru
        _
      %p637 = scmp.le.s32.totalorder 2, %s24
      // Predicated region
      $region65: #{tpu_custom_call.1} parent=5 // pred_check
        %p638 = pneg %p637
      $region66: #{tpu_custom_call.1} parent=5 // pred_check_branch
        %640 = sbr.rel (%p638) target = $region68
      $region67: #{tpu_custom_call.1} parent=5 // pred_region
        %s641 = ssub.s32 %s24, 2
        // Predicated region
        $region69: #{tpu_custom_call.1} parent=67 // pred_check
          %p642 = pneg %p189
        $region70: #{tpu_custom_call.1} parent=67 // pred_check_branch
          %644 = sbr.rel (%p642) target = $region72
        $region71: #{tpu_custom_call.1} parent=67 // pred_region
          %s645 = sand.u32 %s174, 1
          %s646 = scalar_lea.sflag [#allocation4], %s645
          %s647 = sand.u32 %s174, 1
          %s648 = smul.addr %s647, 8
          %s649 = scalar_lea.vmem [#allocation10], %s648
          %651 = dma.done %s646, 128
        $region72: #{tpu_custom_call.1} parent=67 // pred_fallthru
          _
        // Predicated region
        $region73: #{tpu_custom_call.1} parent=67 // pred_check
          %p652 = pneg %p217
        $region74: #{tpu_custom_call.1} parent=67 // pred_check_branch
          %654 = sbr.rel (%p652) target = $region76
        $region75: #{tpu_custom_call.1} parent=67 // pred_region
          %s655 = sand.u32 %s202, 1
          %s656 = scalar_lea.sflag [#allocation12], %s655
          %s657 = sand.u32 %s202, 1
          %s658 = smul.addr %s657, 8
          %s659 = scalar_lea.vmem [#allocation11], %s658
          %661 = dma.done %s656, 128
        $region76: #{tpu_custom_call.1} parent=67 // pred_fallthru
          _
      $region68: #{tpu_custom_call.1} parent=5 // pred_fallthru
        _
    $region6: #{tpu_custom_call.1} parent=1 // loop_footer
      %s28 = sadd.s32 1, %s24
    $region7: #{tpu_custom_call.1} parent=1 // loop_footer_branch
      %23 = sbr.rel target = $region3
    $region8: #{tpu_custom_call.1} parent=1 // loop_exit
      _
    %662 = vsyncpa [#allocation3], 1
    %s663 = scalar_lea.sflag [#allocation3], 1
    %664 = vsyncpa %s663, 1
    %665 = vsyncpa [#allocation6], 1
    %666 = vsyncpa [#allocation9], 1
    %667 = vsyncpa [#allocation4], 1
    %s668 = scalar_lea.sflag [#allocation4], 1
    %669 = vsyncpa %s668, 1
    %670 = vsyncpa [#allocation12], 1
    %s671 = scalar_lea.sflag [#allocation12], 1
    %672 = vsyncpa %s671, 1

</llo_original>
